<compile_context>
chip_gen: v6e
topology: v6e:2x2x1
jax: 0.10.0
libtpu: 0.0.40
codegen_flags: <defaults>
</compile_context>

<pallas_src>
import functools
import math

import jax
import jax.numpy as jnp
from jax import lax
from jax.experimental import pallas as pl
from jax.experimental.pallas import tpu as pltpu

_EPS = 1e-12  # F.normalize default eps


def _cdiv(a, b):
    return -(-a // b)


def _round_up(a, m):
    return _cdiv(a, m) * m


def _sublane_pack(itemsize):
    # Sublane packing per element width: f32 -> 8, bf16 -> 16, int8/fp8 -> 32.
    return {4: 8, 2: 16, 1: 32}.get(int(itemsize), 8)


def _divisors(n):
    return [d for d in range(1, n + 1) if n % d == 0]


@functools.lru_cache(maxsize=1)
def _vmem_capacity_bytes():
    try:
        cap = int(getattr(pltpu.get_tpu_info(), "vmem_capacity_bytes", 0))
        if cap > 0:
            return cap
    except Exception:
        pass
    return 64 * 1024 * 1024  # conservative (v7x per-TensorCore) fallback


def _choose_tn(op128, target=512):
    """Pick a 128-multiple output tile minimizing padding waste, then tile count."""
    best = None
    for tn in range(128, min(target, op128) + 1, 128):
        op = _round_up(op128, tn)
        key = (op - op128, op // tn)  # (padding waste, grid steps)
        if best is None or key < best[0]:
            best = (key, tn, op)
    _, tn, op = best
    return tn, op


def _choose_tiles(B, Fp, tn, no, x_item, w_item, out_item, vmem_cap):
    """Pick (tm, nb, tk, nk, w_bufs, block_bytes) within the VMEM budget.

    Preference: nb == 1 (weights streamed exactly once), full-F blocks (no K
    axis / accumulator), deeper weight buffering when headroom allows.
    """
    budget = int(0.72 * vmem_cap)
    sub = _sublane_pack(x_item)
    lanes = Fp // 128
    bsub = _round_up(max(B, 1), sub)
    w_bufs_pref = 3 if vmem_cap >= 96 * 1024 * 1024 else 2

    def block_bytes(tm, tk, nk, wb):
        b = 2 * tm * tk * x_item            # x blocks (double buffered)
        b += wb * tn * tk * w_item          # weight stream buffers
        b += 2 * tm * tn * out_item         # output blocks (double buffered)
        b += 2 * (tm + tn) * 4              # inv_x / inv_w blocks (tiny)
        if nk > 1:
            b += tm * tn * 4                # f32 accumulator scratch
        return b

    nb = 1
    while True:
        tm = _round_up(_cdiv(bsub, nb), sub)
        for nk in _divisors(lanes):
            tk = Fp // nk
            wbs = (3, 2) if (w_bufs_pref == 3 and no * nk >= 3) else (2,)
            for wb in wbs:
                bb = block_bytes(tm, tk, nk, wb)
                if bb <= budget:
                    return tm, nb, tk, nk, wb, bb
        if tm <= sub:
            break
        nb += 1
    # Last resort: smallest legal tiles (may exceed the soft budget).
    tm = sub
    nb = _cdiv(bsub, sub)
    return tm, nb, 128, lanes, 2, block_bytes(tm, 128, lanes, 2)


def _cosine_kernel_fullk(x_ref, w_ref, inv_x_ref, inv_w_ref, o_ref):
    # x_ref: (tm, Fp), w_ref: (tn, Fp) -- contract the shared last (lane) dim.
    prod = lax.dot_general(
        x_ref[...], w_ref[...],
        dimension_numbers=(((1,), (1,)), ((), ())),
        preferred_element_type=jnp.float32)
    o_ref[...] = (prod * inv_x_ref[...] * inv_w_ref[...]).astype(o_ref.dtype)


def _cosine_kernel_ktiled(x_ref, w_ref, inv_x_ref, inv_w_ref, o_ref, acc_ref):
    k = pl.program_id(2)

    @pl.when(k == 0)
    def _():
        acc_ref[...] = jnp.zeros_like(acc_ref)

    acc_ref[...] += lax.dot_general(
        x_ref[...], w_ref[...],
        dimension_numbers=(((1,), (1,)), ((), ())),
        preferred_element_type=jnp.float32)

    @pl.when(k == pl.num_programs(2) - 1)
    def _():
        o_ref[...] = (acc_ref[...] * inv_x_ref[...] * inv_w_ref[...]).astype(o_ref.dtype)


def prepare_split_cosine_weights(w1, w2, sigma, *, tn_target=512):
    """One-time parameter prep (hoisted out of the per-forward hot path).

    Returns (wp, inv_w, tn, out_features):
      wp:    (Op, Fp)  concat([w1, w2]) zero-padded to tile multiples
      inv_w: (1, Op)   sigma / max(||row||_2, eps) per (padded) weight row
      tn:    Python int output tile width
      out_features: O1 + O2 (to slice the padded kernel output)
    """
    o1, f = w1.shape
    o2, f2 = w2.shape
    assert f == f2, "fc1/fc2 must share in_features"
    O = o1 + o2
    Fp = _round_up(f, 128)
    tn, Op = _choose_tn(_round_up(O, 128), target=tn_target)

    w = jnp.concatenate([w1, w2], axis=0)
    # Zero padding: keeps row norms and dot products exact; padded rows stay 0.
    wp = jnp.pad(w, ((0, Op - O), (0, Fp - f)))
    inv_w = lax.rsqrt(jnp.maximum(
        jnp.sum(wp.astype(jnp.float32) ** 2, axis=1),
        jnp.float32(_EPS * _EPS)))                       # (Op,)
    inv_w = (jnp.asarray(sigma, jnp.float32).reshape(-1) * inv_w).reshape(1, Op)
    return wp, inv_w, int(tn), int(O)


@functools.partial(jax.jit, static_argnames=("tn", "out_features"))
def split_cosine_linear_apply(x, wp, inv_w, *, tn, out_features):
    """Hot-path forward: out = sigma * (normalize(x) @ normalize(W).T), fused W=[W1;W2]."""
    B, F = x.shape
    Op, Fp = wp.shape
    assert F <= Fp and Fp % 128 == 0 and Op % tn == 0

    x_item = jnp.dtype(x.dtype).itemsize
    w_item = jnp.dtype(wp.dtype).itemsize
    out_item = x_item
    vmem_cap = _vmem_capacity_bytes()
    no = Op // tn
    tm, nb, tk, nk, w_bufs, blk_bytes = _choose_tiles(
        B, Fp, tn, no, x_item, w_item, out_item, vmem_cap)
    Bp = nb * tm

    xp = x if (Bp == B and Fp == F) else jnp.pad(x, ((0, Bp - B), (0, Fp - F)))
    # Per-row inverse L2 norm over the full feature dim (padded zeros are inert).
    inv_x = lax.rsqrt(jnp.maximum(
        jnp.sum(xp.astype(jnp.float32) ** 2, axis=1, keepdims=True),
        jnp.float32(_EPS * _EPS)))                       # (Bp, 1)

    # Generation-aware VMEM limit; never clamped below what the blocks need.
    vmem_limit = max(int(0.75 * vmem_cap), blk_bytes + (2 << 20))
    vmem_limit = int(min(vmem_limit, int(0.9 * vmem_cap)))
    vmem_limit = max(vmem_limit, blk_bytes + (1 << 20))

    w_spec_kwargs = {"pipeline_mode": pl.Buffered(w_bufs)} if w_bufs != 2 else {}

    cost = pl.CostEstimate(
        flops=int(2 * Bp * Op * Fp),
        transcendentals=0,
        bytes_accessed=int(no * Bp * Fp * x_item + nb * Op * Fp * w_item
                           + Bp * Op * out_item + (Bp + Op) * 4),
    )

    if nk == 1:
        # Full-F blocks: no accumulator needed.  Output-tile axis leads so the
        # v7x megacore split has a >1 parallel axis even when nb == 1.
        grid_spec = pltpu.PrefetchScalarGridSpec(
            num_scalar_prefetch=0,
            grid=(no, nb),
            in_specs=[
                pl.BlockSpec((tm, Fp), lambda j, i: (i, 0)),                 # x
                pl.BlockSpec((tn, Fp), lambda j, i: (j, 0), **w_spec_kwargs),  # W
                pl.BlockSpec((tm, 1), lambda j, i: (i, 0)),                  # inv_x
                pl.BlockSpec((1, tn), lambda j, i: (0, j)),                  # sigma*inv_w
            ],
            out_specs=pl.BlockSpec((tm, tn), lambda j, i: (i, j)),
        )
        kernel = _cosine_kernel_fullk
        dims = ("parallel", "parallel")
    else:
        # K-tiled path with f32 accumulator (large F / tight VMEM, e.g. v7x).
        grid_spec = pltpu.PrefetchScalarGridSpec(
            num_scalar_prefetch=0,
            grid=(no, nb, nk),
            in_specs=[
                pl.BlockSpec((tm, tk), lambda j, i, k: (i, k)),                 # x
                pl.BlockSpec((tn, tk), lambda j, i, k: (j, k), **w_spec_kwargs),  # W
                pl.BlockSpec((tm, 1), lambda j, i, k: (i, 0)),                  # inv_x
                pl.BlockSpec((1, tn), lambda j, i, k: (0, j)),                  # sigma*inv_w
            ],
            out_specs=pl.BlockSpec((tm, tn), lambda j, i, k: (i, j)),
            scratch_shapes=[pltpu.VMEM((tm, tn), jnp.float32)],
        )
        kernel = _cosine_kernel_ktiled
        dims = ("parallel", "parallel", "arbitrary")

    out = pl.pallas_call(
        kernel,
        out_shape=jax.ShapeDtypeStruct((Bp, Op), x.dtype),
        grid_spec=grid_spec,
        compiler_params=pltpu.CompilerParams(
            dimension_semantics=dims,
            vmem_limit_bytes=int(vmem_limit)),
        cost_estimate=cost,
    )(xp, wp, inv_x, inv_w)

    return out[:B, :out_features]


def split_cosine_linear(x, w1, w2, sigma):
    """One-shot convenience wrapper.  In training/serving loops call
    prepare_split_cosine_weights once per parameter update and reuse its
    outputs with split_cosine_linear_apply (keeps the O(O*F) concat/pad/norm
    of the weights out of the per-step hot path)."""
    wp, inv_w, tn, out_features = prepare_split_cosine_weights(w1, w2, sigma)
    return split_cosine_linear_apply(x, wp, inv_w, tn=tn, out_features=out_features)


def _reference(x, w1, w2, sigma):
    def l2norm(a):
        n = jnp.sqrt(jnp.sum(a.astype(jnp.float32) ** 2, axis=1, keepdims=True))
        return a / jnp.maximum(n, _EPS)

    out1 = l2norm(x) @ l2norm(w1).T
    out2 = l2norm(x) @ l2norm(w2).T
    return jnp.asarray(sigma, jnp.float32) * jnp.concatenate([out1, out2], axis=1)


if __name__ == "__main__":
    # Small shapes consistent with the module's forward pass.
    in_features = 32
    out_features1 = 8
    out_features2 = 8
    batch = 4

    key = jax.random.PRNGKey(0)
    kx, k1, k2 = jax.random.split(key, 3)

    # Deterministic init matching reset_parameters():
    # uniform(-stdv, stdv), stdv = 1/sqrt(in_features); sigma = 1.0.
    stdv = 1.0 / math.sqrt(in_features)
    w1 = jax.random.uniform(k1, (out_features1, in_features),
                            minval=-stdv, maxval=stdv, dtype=jnp.float32)
    w2 = jax.random.uniform(k2, (out_features2, in_features),
                            minval=-stdv, maxval=stdv, dtype=jnp.float32)
    sigma = jnp.float32(1.0)
    x = jax.random.normal(kx, (batch, in_features), dtype=jnp.float32)

    # One-time hoisted weight prep (outside the per-step hot path).
    wp, inv_w, tn, out_features = prepare_split_cosine_weights(w1, w2, sigma)

    out = split_cosine_linear_apply(x, wp, inv_w, tn=tn, out_features=out_features)
    out = jax.block_until_ready(out)

    ref = _reference(x, w1, w2, sigma)
    assert out.shape == (batch, out_features1 + out_features2)
    assert jnp.allclose(out, ref, atol=1e-5, rtol=1e-4), (out, ref)

    print("KERNEL_OK")
</pallas_src>

<mosaic_0001>
module attributes {stable_mosaic.version = 11 : i64} {
  func.func @_cosine_kernel_fullk(%arg0: i32, %arg1: i32, %arg2: memref<8x128xf32, #tpu.memory_space<vmem>>, %arg3: memref<128x128xf32, #tpu.memory_space<vmem>>, %arg4: memref<8x1xf32, #tpu.memory_space<vmem>>, %arg5: memref<1x128xf32, #tpu.memory_space<vmem>>, %arg6: memref<8x128xf32, #tpu.memory_space<vmem>>) attributes {dimension_semantics = [#tpu.dimension_semantics<parallel>, #tpu.dimension_semantics<parallel>], iteration_bounds = array<i64: 1, 1>, scalar_prefetch = 0 : i64, scratch_operands = 0 : i64, tpu.core_type = #tpu.core_type<tc>, window_params = [{transform_indices = @transform_0, window_bounds = array<i64: 8, 128>}, {transform_indices = @transform_1, window_bounds = array<i64: 128, 128>}, {transform_indices = @transform_2, window_bounds = array<i64: 8, 1>}, {transform_indices = @transform_3, window_bounds = array<i64: 1, 128>}, {transform_indices = @transform_4, window_bounds = array<i64: 8, 128>}]} {
    %c0 = arith.constant 0 : index
    %c0_0 = arith.constant 0 : index
    %0 = vector.load %arg2[%c0, %c0_0] : memref<8x128xf32, #tpu.memory_space<vmem>>, vector<8x128xf32>
    %c0_1 = arith.constant 0 : index
    %c0_2 = arith.constant 0 : index
    %1 = vector.load %arg3[%c0_1, %c0_2] : memref<128x128xf32, #tpu.memory_space<vmem>>, vector<128x128xf32>
    %cst = arith.constant dense<0.000000e+00> : vector<8x128xf32>
    %2 = tpu.matmul %0, %1, %cst {dimension_numbers = #tpu.dot_dimension_numbers<[1], [1], [0], [0], [0, 0, 1, 0], [], []>} : vector<8x128xf32>, vector<128x128xf32>, vector<8x128xf32> -> vector<8x128xf32>
    %c0_3 = arith.constant 0 : index
    %c0_4 = arith.constant 0 : index
    %3 = vector.load %arg4[%c0_3, %c0_4] : memref<8x1xf32, #tpu.memory_space<vmem>>, vector<8x1xf32>
    %4 = vector.broadcast %3 : vector<8x1xf32> to vector<8x128xf32>
    %5 = arith.mulf %2, %4 : vector<8x128xf32>
    %c0_5 = arith.constant 0 : index
    %c0_6 = arith.constant 0 : index
    %6 = vector.load %arg5[%c0_5, %c0_6] : memref<1x128xf32, #tpu.memory_space<vmem>>, vector<1x128xf32>
    %7 = vector.broadcast %6 : vector<1x128xf32> to vector<8x128xf32>
    %8 = arith.mulf %5, %7 : vector<8x128xf32>
    %c0_7 = arith.constant 0 : index
    %c0_8 = arith.constant 0 : index
    %9 = vector.load %arg6[%c0_7, %c0_8] : memref<8x128xf32, #tpu.memory_space<vmem>>, vector<8x128xf32>
    tpu.vector_store %arg6[%c0_7, %c0_8], %8 {strides = array<i32>} : memref<8x128xf32, #tpu.memory_space<vmem>>, vector<8x128xf32>,
    return
  }
  func.func @transform_0(%arg0: i32, %arg1: i32) -> (i32, i32) {
    %c0_i32 = arith.constant 0 : i32
    %c0_i32_0 = arith.constant 0 : i32
    return %arg1, %c0_i32 : i32, i32
  }
  func.func @transform_1(%arg0: i32, %arg1: i32) -> (i32, i32) {
    %c0_i32 = arith.constant 0 : i32
    %c0_i32_0 = arith.constant 0 : i32
    return %arg0, %c0_i32 : i32, i32
  }
  func.func @transform_2(%arg0: i32, %arg1: i32) -> (i32, i32) {
    %c0_i32 = arith.constant 0 : i32
    %c0_i32_0 = arith.constant 0 : i32
    return %arg1, %c0_i32 : i32, i32
  }
  func.func @transform_3(%arg0: i32, %arg1: i32) -> (i32, i32) {
    %c0_i32 = arith.constant 0 : i32
    %c0_i32_0 = arith.constant 0 : i32
    return %c0_i32, %arg0 : i32, i32
  }
  func.func @transform_4(%arg0: i32, %arg1: i32) -> (i32, i32) {
    %c0_i32 = arith.constant 0 : i32
    return %arg1, %arg0 : i32, i32
  }
}

</mosaic_0001>

<llo_original>
// kernel: split_cosine_linear_apply.1
$region0: #{split_cosine_linear_apply.1}
  #allocation0 [shape = 'u32[]', space=smem, size = 0x4, offset = 0x4, fixed_abs, tag = 'smem constant byte address 0x4 - core index']
  #allocation1 [shape = 'u32[144,128]{1,0:T(1,128)}', space=vmem, size = 0x12000, scoped, tag = 'internal scratch']
  %s0 = inlined_call_operand.vmem [shape: f32[8,128], index: 0, kind: input, shape index: {}]
  %s1 = inlined_call_operand.hbm [shape: f32[128,128], index: 1, kind: input, shape index: {}]
  %s2 = inlined_call_operand.vmem [shape: f32[8,1], index: 2, kind: input, shape index: {}]
  %s3 = inlined_call_operand.vmem [shape: f32[1,128], index: 3, kind: input, shape index: {}]
  %s4 = inlined_call_operand.vmem [shape: f32[8,128], index: 4, kind: output, shape index: {}]
  %s5 = sld [smem:[#allocation0]]
  $region30: #{split_cosine_linear_apply.1} parent=0
    _
  %s7 = ssub.s32 1, %s5
  %s8 = scalar_select 0, %s7, %s5
  $region1: #{split_cosine_linear_apply.1} parent=0
    #allocation2 [shape = 'u8[65536]{0}', space=vmem, size = 0x10000, scoped, tag = 'input window, operand 1, single buffered']
    #allocation3 [shape = 's32[1]{0}', space=sflag, size = 0x4, scoped, tag = 'scoped memory for split_cosine_linear_apply.1']
    %9 = vsyncpa [#allocation3], 0
    // Predicated region
    $region2: #{split_cosine_linear_apply.1} parent=1 // pred_check
      _
    $region3: #{split_cosine_linear_apply.1} parent=1 // pred_check_branch
      %11 = sbr.rel (0) target = $region5
    $region4: #{split_cosine_linear_apply.1} parent=1 // pred_region
      _
    $region5: #{split_cosine_linear_apply.1} parent=1 // pred_fallthru
      _
    // Predicated region
    $region6: #{split_cosine_linear_apply.1} parent=1 // pred_check
      _
    $region7: #{split_cosine_linear_apply.1} parent=1 // pred_check_branch
      %13 = sbr.rel (0) target = $region9
    $region8: #{split_cosine_linear_apply.1} parent=1 // pred_region
      %s15 = ssub.s32 2048, 2048
      %16 = vsyncadd [#allocation3], %s15
      %s17 = sshll.u32 [#allocation2], 4
      %s18 = int_to_ptr.vmem [resolvable:$true] %s17
      %23 = dma.hbm_to_vmem [thread:$0]  %s1, 2048, %s18, [#allocation3], 128, 128, 8
    $region9: #{split_cosine_linear_apply.1} parent=1 // pred_fallthru
      _
    // Predicated region
    $region10: #{split_cosine_linear_apply.1} parent=1 // pred_check
      _
    $region11: #{split_cosine_linear_apply.1} parent=1 // pred_check_branch
      %25 = sbr.rel (0) target = $region13
    $region12: #{split_cosine_linear_apply.1} parent=1 // pred_region
      _
    $region13: #{split_cosine_linear_apply.1} parent=1 // pred_fallthru
      _
    // Predicated region
    $region14: #{split_cosine_linear_apply.1} parent=1 // pred_check
      _
    $region15: #{split_cosine_linear_apply.1} parent=1 // pred_check_branch
      %27 = sbr.rel (0) target = $region17
    $region16: #{split_cosine_linear_apply.1} parent=1 // pred_region
      _
    $region17: #{split_cosine_linear_apply.1} parent=1 // pred_fallthru
      _
    // Predicated region
    $region18: #{split_cosine_linear_apply.1} parent=1 // pred_check
      _
    $region19: #{split_cosine_linear_apply.1} parent=1 // pred_check_branch
      %29 = sbr.rel (0) target = $region21
    $region20: #{split_cosine_linear_apply.1} parent=1 // pred_region
      %30 = dma.done [#allocation3], 2048
    $region21: #{split_cosine_linear_apply.1} parent=1 // pred_fallthru
      _
    %v31 = vld [vmem:[%s0] sm:$0xff]
    %v32 = vld [vmem:[#allocation2] sm:$0xff]
    %v33 = vld [vmem:[#allocation2 + $0x8] sm:$0xff]
    %v34 = vld [vmem:[#allocation2 + $0x10] sm:$0xff]
    %v35 = vld [vmem:[#allocation2 + $0x18] sm:$0xff]
    %v36 = vld [vmem:[#allocation2 + $0x20] sm:$0xff]
    %v37 = vld [vmem:[#allocation2 + $0x28] sm:$0xff]
    %v38 = vld [vmem:[#allocation2 + $0x30] sm:$0xff]
    %v39 = vld [vmem:[#allocation2 + $0x38] sm:$0xff]
    %v40 = vld [vmem:[#allocation2 + $0x40] sm:$0xff]
    %v41 = vld [vmem:[#allocation2 + $0x48] sm:$0xff]
    %v42 = vld [vmem:[#allocation2 + $0x50] sm:$0xff]
    %v43 = vld [vmem:[#allocation2 + $0x58] sm:$0xff]
    %v44 = vld [vmem:[#allocation2 + $0x60] sm:$0xff]
    %v45 = vld [vmem:[#allocation2 + $0x68] sm:$0xff]
    %v46 = vld [vmem:[#allocation2 + $0x70] sm:$0xff]
    %v47 = vld [vmem:[#allocation2 + $0x78] sm:$0xff]
    %48 = vmatprep.subr.mxu0 0.0
    %49 = vmatpush1.xpose.msra.mxu0 %v47
    %50 = vmatprep.subr.mxu0 0.0
    %51 = vmatpush1.xpose.msra.mxu0 %v46
    %52 = vmatprep.subr.mxu0 0.0
    %53 = vmatpush1.xpose.msra.mxu0 %v45
    %54 = vmatprep.subr.mxu0 0.0
    %55 = vmatpush1.xpose.msra.mxu0 %v44
    %56 = vmatprep.subr.mxu0 0.0
    %57 = vmatpush1.xpose.msra.mxu0 %v43
    %58 = vmatprep.subr.mxu0 0.0
    %59 = vmatpush1.xpose.msra.mxu0 %v42
    %60 = vmatprep.subr.mxu0 0.0
    %61 = vmatpush1.xpose.msra.mxu0 %v41
    %62 = vmatprep.subr.mxu0 0.0
    %63 = vmatpush1.xpose.msra.mxu0 %v40
    %64 = vmatprep.subr.mxu0 0.0
    %65 = vmatpush1.xpose.msra.mxu0 %v39
    %66 = vmatprep.subr.mxu0 0.0
    %67 = vmatpush1.xpose.msra.mxu0 %v38
    %68 = vmatprep.subr.mxu0 0.0
    %69 = vmatpush1.xpose.msra.mxu0 %v37
    %70 = vmatprep.subr.mxu0 0.0
    %71 = vmatpush1.xpose.msra.mxu0 %v36
    %72 = vmatprep.subr.mxu0 0.0
    %73 = vmatpush1.xpose.msra.mxu0 %v35
    %74 = vmatprep.subr.mxu0 0.0
    %75 = vmatpush1.xpose.msra.mxu0 %v34
    %76 = vmatprep.subr.mxu0 0.0
    %77 = vmatpush1.xpose.msra.mxu0 %v33
    %78 = vmatprep.subr.mxu0 0.0
    %79 = vmatpush1.xpose.msra.mxu0 %v32
    %80 = vmatprep.subr.mxu0 0.0
    %81 = vmatpush2.xpose.msra.mxu0 0.0
    %82 = vmatprep.subr.mxu0 0.0
    %83 = vmatpush2.xpose.msra.mxu0 0.0
    %84 = vmatprep.subr.mxu0 0.0
    %85 = vmatpush2.xpose.msra.mxu0 0.0
    %86 = vmatprep.subr.mxu0 0.0
    %87 = vmatpush2.xpose.msra.mxu0 0.0
    %88 = vmatprep.subr.mxu0 0.0
    %89 = vmatpush2.xpose.msra.mxu0 0.0
    %90 = vmatprep.subr.mxu0 0.0
    %91 = vmatpush2.xpose.msra.mxu0 0.0
    %92 = vmatprep.subr.mxu0 0.0
    %93 = vmatpush2.xpose.msra.mxu0 0.0
    %94 = vmatprep.subr.mxu0 0.0
    %95 = vmatpush2.xpose.msra.mxu0 0.0
    %96 = vmatprep.subr.mxu0 0.0
    %97 = vmatpush2.xpose.msra.mxu0 0.0
    %98 = vmatprep.subr.mxu0 0.0
    %99 = vmatpush2.xpose.msra.mxu0 0.0
    %100 = vmatprep.subr.mxu0 0.0
    %101 = vmatpush2.xpose.msra.mxu0 0.0
    %102 = vmatprep.subr.mxu0 0.0
    %103 = vmatpush2.xpose.msra.mxu0 0.0
    %104 = vmatprep.subr.mxu0 0.0
    %105 = vmatpush2.xpose.msra.mxu0 0.0
    %106 = vmatprep.subr.mxu0 0.0
    %107 = vmatpush2.xpose.msra.mxu0 0.0
    %108 = vmatprep.subr.mxu0 0.0
    %109 = vmatpush2.xpose.msra.mxu0 0.0
    %110 = vmatprep.subr.mxu0 0.0
    %111 = vmatpush2.xpose.msra.mxu0 0.0
    %112 = vmatprep.mubr.f32.mxu0 0.0
    %113 = vmatmul.mubr.f32.gmra.mxu0 %v31
    %v114 = vpop.f32.mrf.mxu0
    %v115 = vadd.f32 0.0, %v114
    %v116 = vpop.f32.mrf.mxu0
    %117 = vdwg.mxu0
    %v118 = vld [vmem:[%s2] sm:$0xff]
    %120 = vset.pattern.permute.xlu0 0
    %121 = vperm.xlu0 %120, %v118
    %v122 = vpop.permute.xlu0 %121
    %v124 = vmul.f32 %v115, %v122
    %v125 = vld [vmem:[%s3] sm:$0x1]
    %v127 = vlaneseq
    %v128 = vshrl.u32 %v127, 7
    %v129 = vsub.s32 0, %v128
    %v130 = vrot.slane %v125, %v129
    %v132 = vmul.f32 %v124, %v130
    %133 = vst [vmem:[%s4] sm:$0xff] %v132
    // Predicated region
    $region22: #{split_cosine_linear_apply.1} parent=1 // pred_check
      _
    $region23: #{split_cosine_linear_apply.1} parent=1 // pred_check_branch
      %135 = sbr.rel (0) target = $region25
    $region24: #{split_cosine_linear_apply.1} parent=1 // pred_region
      _
    $region25: #{split_cosine_linear_apply.1} parent=1 // pred_fallthru
      _
    // Predicated region
    $region26: #{split_cosine_linear_apply.1} parent=1 // pred_check
      _
    $region27: #{split_cosine_linear_apply.1} parent=1 // pred_check_branch
      %137 = sbr.rel (0) target = $region29
    $region28: #{split_cosine_linear_apply.1} parent=1 // pred_region
      _
    $region29: #{split_cosine_linear_apply.1} parent=1 // pred_fallthru
      _
    %138 = vsyncpa [#allocation3], 1

</llo_original>
